<compile_context>
chip_gen: v6e
topology: v6e:2x2x1
jax: 0.10.0
libtpu: 0.0.40
codegen_flags: <defaults>
</compile_context>

<pallas_src>
import functools
import math

import jax
import jax.numpy as jnp
from jax.experimental import pallas as pl
from jax.experimental.pallas import tpu as pltpu

LANES = 128


def _gelu(x):
    # TODO(synk): PyTorch nn.GELU() defaults to the exact erf form; the tanh
    # approximation is used because it lowers reliably to the TPU EUP
    # (per-activation difference < 1e-3). The pure-JAX reference uses the same
    # form so the comparison below is apples-to-apples.
    return jax.nn.gelu(x, approximate=True)


# ---------------------------------------------------------------------------
# Static (trace-time) chip detection.
# ---------------------------------------------------------------------------

def _device_kind():
    try:
        return jax.devices()[0].device_kind.lower()
    except Exception:
        return ""


def _vmem_capacity_bytes(kind):
    try:
        return int(pltpu.get_tpu_info().vmem_capacity_bytes)
    except Exception:
        # v7x: 64 MiB per TensorCore; v5e/v6e: 128 MiB.
        return (64 << 20) if "7" in kind else (128 << 20)


def _num_tensorcores(kind):
    # v7x exposes 2 TensorCores per chip (a "parallel" grid axis shards across
    # them); v4/v5p megacore behaves the same. v5e/v6e have a single TC.
    return 2 if any(t in kind for t in ("7x", "v7", "v4", "v5p")) else 1


def _is_v5e(kind):
    # v5e has no bf16 VALU/EUP, so keep activations f32 there.
    return ("v5 lite" in kind) or ("v5e" in kind) or ("v5lite" in kind)


def _supports_buffered():
    try:
        pl.BlockSpec((8, LANES), lambda i: (0, 0), pipeline_mode=pl.Buffered(1))
        return True
    except Exception:
        return False


_SINGLE_BUFFER_OK = _supports_buffered()


def _invariant_spec(block_shape, single_buffer):
    """BlockSpec for a grid-invariant operand (weights/biases).

    Single-buffered (pl.Buffered(1)) when there is more than one grid block so
    the second buffer's VMEM is freed for the patch M tile; with a single grid
    block there is nothing to pipeline so the default is kept.
    """
    index_map = lambda i: (0,) * len(block_shape)
    if single_buffer and _SINGLE_BUFFER_OK:
        return pl.BlockSpec(block_shape, index_map, pipeline_mode=pl.Buffered(1))
    return pl.BlockSpec(block_shape, index_map)


# ---------------------------------------------------------------------------
# Kernel.
# ---------------------------------------------------------------------------

def _make_kernel(bt, npatch, act_dtype):
    """Kernel processing `bt` whole batch elements (bt * npatch rows) per step."""

    def kernel(p_ref, we_ref, be_ref, wh_ref, bh_ref, wl_ref, o_ref):
        # p_ref: [bt*npatch, Kdim] bf16 patch rows.
        p = p_ref[...]

        # ---- ImageEncoder: patch embedding (MXU, f32 accumulate) + GELU ----
        f = jnp.dot(p, we_ref[...], preferred_element_type=jnp.float32)
        # bf16 activation on v6e/v7x (bf16 VPU/EUP); f32 on v5e.
        f = _gelu((f + be_ref[...]).astype(act_dtype))        # [Mt, 128]

        # ---- VQAHeadMLP.fc_hid + GELU ----
        h = jnp.dot(f.astype(jnp.bfloat16), wh_ref[...],
                    preferred_element_type=jnp.float32)
        h = _gelu(h + bh_ref[...])                            # [Mt, 128] f32

        # ---- fc_last + scores.flatten(1).mean(1), commuted (both linear):
        #      mean over the Np locations first, then a 128-lane dot with the
        #      fc_last row on the VPU/XLU (no [Np,1] MXU matmul, f32 accum).
        hp = h.shape[-1]
        if bt == 1:
            m = jnp.mean(h, axis=0, keepdims=True)            # [1, 128]
        else:
            m = jnp.mean(h.reshape(bt, npatch, hp), axis=1)   # [bt, 128]
        score = jnp.sum(m * wl_ref[...], axis=-1, keepdims=True)

        # Lane-dense full-block store (score broadcast across 128 lanes).
        o_ref[0] = jnp.broadcast_to(score, (bt, LANES))

    return kernel


# ---------------------------------------------------------------------------
# Wrapper-side helpers.
# ---------------------------------------------------------------------------

def extract_patches(x, patch):
    """NCHW -> [B*Np, C*P*P] rows in PyTorch conv im2col (C, ph, pw) order.

    The producing reshape/transpose/bf16-cast chain is allowed to fuse into the
    pallas_call input DMA (CompilerParams(allow_input_fusion=...)), so the
    im2col matrix is not a separate HBM materialization + re-read.
    # TODO(synk): a fully in-kernel im2col (BlockSpec delivering raw NCHW
    # strips + VMEM regroup) would remove even the fused transpose cost, but
    # the required 6-D regroup does not lower cleanly in Mosaic today.
    """
    B, C, H, W = x.shape
    P = patch
    p = x.reshape(B, C, H // P, P, W // P, P)
    p = p.transpose(0, 2, 4, 1, 3, 5)
    return p.reshape(B * (H // P) * (W // P), C * P * P)


def _pad_params(params):
    """Zero-pad feature dims to 128-lane multiples (exact: GELU(0)=0), bf16 weights."""
    w_emb, b_emb, w_hid, b_hid, w_last = params
    kdim, d = w_emb.shape
    hd = w_hid.shape[1]
    d_pad = max(LANES, -(-d // LANES) * LANES)
    h_pad = max(LANES, -(-hd // LANES) * LANES)
    w_emb_p = jnp.zeros((kdim, d_pad), jnp.float32).at[:, :d].set(w_emb)
    b_emb_p = jnp.zeros((1, d_pad), jnp.float32).at[:, :d].set(b_emb)
    w_hid_p = jnp.zeros((d_pad, h_pad), jnp.float32).at[:d, :hd].set(w_hid)
    b_hid_p = jnp.zeros((1, h_pad), jnp.float32).at[:, :hd].set(b_hid)
    wl_row = jnp.zeros((1, h_pad), jnp.float32).at[:, :hd].set(w_last[:, 0])
    return (w_emb_p.astype(jnp.bfloat16), b_emb_p,
            w_hid_p.astype(jnp.bfloat16), b_hid_p, wl_row)


def _choose_bt(batch, npatch, kdim, *, num_tc, vmem_input_budget,
               target_rows=2048, min_rows_per_step=256):
    """Batch elements folded into each grid step's M tile."""
    # Largest bt under the row target and the double-buffered input budget.
    bt = max(1, target_rows // max(npatch, 1))
    row_bytes = npatch * kdim * 2                      # bf16 patch rows
    while bt > 1 and 2 * bt * row_bytes > vmem_input_budget:
        bt -= 1
    bt = min(bt, batch)
    # Multi-TensorCore chips (v7x / megacore): aim for >=2 grid blocks per core
    # so each core overlaps its patch DMA with compute -- but never shrink a
    # step below ~min_rows_per_step rows just to manufacture extra steps.
    # Single-TC chips (v5e/v6e) keep the big tile.
    if num_tc > 1:
        per_core = max(1, batch // (2 * num_tc))
        if per_core * npatch >= min_rows_per_step:
            bt = min(bt, per_core)
    # Keep Mt = bt*Np a multiple of 8 (sublane rule on the patch BlockSpec when
    # the grid has >1 block); batch is zero-padded to a multiple of bt.
    align = 8 // math.gcd(npatch, 8)
    bt = max(align, (bt // align) * align)
    return bt


# ---------------------------------------------------------------------------
# Forward.
# ---------------------------------------------------------------------------

@functools.partial(jax.jit, static_argnames=("patch",))
def iqa_forward(x, params, patch=4):
    B, C, H, W = x.shape
    P = patch
    Np = (H // P) * (W // P)
    Kdim = C * P * P

    w_emb_t, b_emb_t, w_hid_t, b_hid_t, w_last_t, b_last_t = params
    w_emb, b_emb, w_hid, b_hid, wl_row = _pad_params(
        (w_emb_t, b_emb_t, w_hid_t, b_hid_t, w_last_t))
    Dp = w_emb.shape[1]
    Hp = w_hid.shape[1]

    # Chip-aware VMEM / tiling parameters (static at trace time).
    kind = _device_kind()
    num_tc = _num_tensorcores(kind)
    vmem_cap = _vmem_capacity_bytes(kind)
    # ~3/4 of physical VMEM, leaving headroom for compiler scratch:
    # 96 MiB on 128-MiB chips (v5e/v6e), 48 MiB on 64-MiB v7x.
    vmem_limit = max(32 << 20, min((vmem_cap * 3) // 4, vmem_cap - (16 << 20)))
    weight_bytes = (Kdim * Dp + Dp * Hp) * 2 + (2 * Dp + 2 * Hp) * 4
    vmem_input_budget = max(4 << 20, (vmem_limit - 2 * weight_bytes) // 2 - (4 << 20))

    bt = _choose_bt(B, Np, Kdim, num_tc=num_tc,
                    vmem_input_budget=vmem_input_budget)
    B_pad = -(-B // bt) * bt
    nblocks = B_pad // bt
    Mt = bt * Np

    # Patch rows in PyTorch-conv (C, ph, pw) feature order (permutation folded
    # into w_emb); producer fuses into the input DMA via allow_input_fusion.
    patches = extract_patches(x, P).astype(jnp.bfloat16)       # [B*Np, Kdim]
    if B_pad != B:
        patches = jnp.pad(patches, ((0, (B_pad - B) * Np), (0, 0)))

    act_dtype = jnp.float32 if _is_v5e(kind) else jnp.bfloat16
    single_buffer = nblocks > 1

    out = pl.pallas_call(
        _make_kernel(bt, Np, act_dtype),
        out_shape=jax.ShapeDtypeStruct((nblocks, bt, LANES), jnp.float32),
        grid=(nblocks,),
        in_specs=[
            pl.BlockSpec((Mt, Kdim), lambda i: (i, 0)),         # patch rows
            _invariant_spec((Kdim, Dp), single_buffer),         # w_emb (resident)
            _invariant_spec((1, Dp), single_buffer),            # b_emb
            _invariant_spec((Dp, Hp), single_buffer),           # w_hid
            _invariant_spec((1, Hp), single_buffer),            # b_hid
            _invariant_spec((1, Hp), single_buffer),            # fc_last row
        ],
        out_specs=pl.BlockSpec((1, bt, LANES), lambda i: (i, 0, 0)),
        compiler_params=pltpu.CompilerParams(
            dimension_semantics=("parallel",),
            vmem_limit_bytes=int(vmem_limit),
            allow_input_fusion=[True, False, False, False, False, False],
        ),
    )(patches, w_emb, b_emb, w_hid, b_hid, wl_row)

    scores = out[:, :, 0].reshape(B_pad)[:B]
    # fc_last's scalar bias commutes with the spatial mean; folded in here so
    # the kernel needs no (1,1) VMEM operand.
    return scores + jnp.asarray(b_last_t, jnp.float32).reshape(())


# ---------------------------------------------------------------------------
# Pure-JAX reference and parameter construction.
# ---------------------------------------------------------------------------

def reference_forward(x, params, patch=4):
    """Pure-JAX f32 reference (mirrors the PyTorch forward)."""
    w_emb, b_emb, w_hid, b_hid, w_last, b_last = params
    B, C, H, W = x.shape
    p = extract_patches(x, patch).reshape(B, -1, C * patch * patch)
    f = _gelu(jnp.einsum("bnk,kd->bnd", p, w_emb) + b_emb)
    h = _gelu(jnp.einsum("bnd,dh->bnh", f, w_hid) + b_hid)
    s = jnp.einsum("bnh,ho->bno", h, w_last) + b_last          # [B, Np, 1]
    return s.reshape(B, -1).mean(axis=1)


def make_params(key, C=3, P=4, D=32, Hd=16):
    Kdim = C * P * P
    ks = jax.random.split(key, 6)
    # Conv2d(C, D, P, P) weight in PyTorch layout, flattened to a matmul weight
    # in the same (C, ph, pw) order extract_patches produces.
    conv_w = jax.random.normal(ks[0], (D, C, P, P), jnp.float32) * 0.05
    w_emb = conv_w.reshape(D, Kdim).T                           # [Kdim, D]
    b_emb = jax.random.normal(ks[1], (1, D), jnp.float32) * 0.01
    w_hid = jax.random.normal(ks[2], (D, Hd), jnp.float32) * 0.05
    b_hid = jax.random.normal(ks[3], (1, Hd), jnp.float32) * 0.01
    w_last = jax.random.normal(ks[4], (Hd, 1), jnp.float32) * 0.05
    b_last = jax.random.normal(ks[5], (1, 1), jnp.float32) * 0.01
    return (w_emb, b_emb, w_hid, b_hid, w_last, b_last)


if __name__ == "__main__":
    B, C, H, W = 2, 3, 16, 16
    P, D, Hd = 4, 32, 16

    key = jax.random.PRNGKey(0)
    kx, kp = jax.random.split(key)
    x = jax.random.normal(kx, (B, C, H, W), jnp.float32)
    params = make_params(kp, C=C, P=P, D=D, Hd=Hd)

    out = jax.block_until_ready(iqa_forward(x, params, patch=P))
    ref = reference_forward(x, params, patch=P)

    assert out.shape == (B,), out.shape
    # Kernel runs bf16 matmuls (f32 accumulation) and, on v6e/v7x, a bf16 GELU
    # for the embedding activation; tolerance vs the f32 reference is loosened.
    assert jnp.allclose(out, ref, atol=5e-3, rtol=5e-2), (out, ref)

    print("KERNEL_OK")
</pallas_src>

<mosaic_0001>
module attributes {stable_mosaic.version = 11 : i64} {
  func.func @kernel(%arg0: i32, %arg1: memref<32x48xbf16, #tpu.memory_space<vmem>>, %arg2: memref<48x128xbf16, #tpu.memory_space<vmem>>, %arg3: memref<1x128xf32, #tpu.memory_space<vmem>>, %arg4: memref<128x128xbf16, #tpu.memory_space<vmem>>, %arg5: memref<1x128xf32, #tpu.memory_space<vmem>>, %arg6: memref<1x128xf32, #tpu.memory_space<vmem>>, %arg7: memref<1x2x128xf32, #tpu.memory_space<vmem>>) attributes {dimension_semantics = [#tpu.dimension_semantics<parallel>], iteration_bounds = array<i64: 1>, scalar_prefetch = 0 : i64, scratch_operands = 0 : i64, tpu.core_type = #tpu.core_type<tc>, window_params = [{transform_indices = @transform_0, window_bounds = array<i64: 32, 48>}, {pipeline_mode = #tpu.pipeline_mode<synchronous>, transform_indices = @transform_1, window_bounds = array<i64: 48, 128>}, {pipeline_mode = #tpu.pipeline_mode<synchronous>, transform_indices = @transform_2, window_bounds = array<i64: 1, 128>}, {pipeline_mode = #tpu.pipeline_mode<synchronous>, transform_indices = @transform_3, window_bounds = array<i64: 128, 128>}, {pipeline_mode = #tpu.pipeline_mode<synchronous>, transform_indices = @transform_4, window_bounds = array<i64: 1, 128>}, {pipeline_mode = #tpu.pipeline_mode<synchronous>, transform_indices = @transform_5, window_bounds = array<i64: 1, 128>}, {transform_indices = @transform_6, window_bounds = array<i64: 1, 2, 128>}]} {
    %c0 = arith.constant 0 : index
    %c0_0 = arith.constant 0 : index
    %0 = vector.load %arg1[%c0, %c0_0] : memref<32x48xbf16, #tpu.memory_space<vmem>>, vector<32x48xbf16>
    %c0_1 = arith.constant 0 : index
    %c0_2 = arith.constant 0 : index
    %1 = vector.load %arg2[%c0_1, %c0_2] : memref<48x128xbf16, #tpu.memory_space<vmem>>, vector<48x128xbf16>
    %cst = arith.constant dense<0.000000e+00> : vector<32x128xf32>
    %2 = tpu.matmul %0, %1, %cst {dimension_numbers = #tpu.dot_dimension_numbers<[1], [0], [0], [1], [0, 0, 1, 1], [], []>} : vector<32x48xbf16>, vector<48x128xbf16>, vector<32x128xf32> -> vector<32x128xf32>
    %c0_3 = arith.constant 0 : index
    %c0_4 = arith.constant 0 : index
    %3 = vector.load %arg3[%c0_3, %c0_4] : memref<1x128xf32, #tpu.memory_space<vmem>>, vector<1x128xf32>
    %4 = vector.broadcast %3 : vector<1x128xf32> to vector<32x128xf32>
    %5 = arith.addf %2, %4 : vector<32x128xf32>
    %6 = arith.truncf %5 : vector<32x128xf32> to vector<32x128xbf16>
    %7 = arith.mulf %6, %6 : vector<32x128xbf16>
    %8 = arith.mulf %6, %7 : vector<32x128xbf16>
    %cst_5 = arith.constant 4.467770e-02 : bf16
    %9 = vector.broadcast %cst_5 : bf16 to vector<32x128xbf16>
    %10 = arith.mulf %9, %8 : vector<32x128xbf16>
    %11 = arith.addf %6, %10 : vector<32x128xbf16>
    %cst_6 = arith.constant 7.968750e-01 : bf16
    %12 = vector.broadcast %cst_6 : bf16 to vector<32x128xbf16>
    %13 = arith.mulf %12, %11 : vector<32x128xbf16>
    %14 = math.tanh %13 : vector<32x128xbf16>
    %cst_7 = arith.constant 1.000000e+00 : bf16
    %15 = vector.broadcast %cst_7 : bf16 to vector<32x128xbf16>
    %16 = arith.addf %15, %14 : vector<32x128xbf16>
    %cst_8 = arith.constant 5.000000e-01 : bf16
    %17 = vector.broadcast %cst_8 : bf16 to vector<32x128xbf16>
    %18 = arith.mulf %17, %16 : vector<32x128xbf16>
    %19 = arith.mulf %6, %18 : vector<32x128xbf16>
    %c0_9 = arith.constant 0 : index
    %c0_10 = arith.constant 0 : index
    %20 = vector.load %arg4[%c0_9, %c0_10] : memref<128x128xbf16, #tpu.memory_space<vmem>>, vector<128x128xbf16>
    %cst_11 = arith.constant dense<0.000000e+00> : vector<32x128xf32>
    %21 = tpu.matmul %19, %20, %cst_11 {dimension_numbers = #tpu.dot_dimension_numbers<[1], [0], [0], [1], [0, 0, 1, 1], [], []>} : vector<32x128xbf16>, vector<128x128xbf16>, vector<32x128xf32> -> vector<32x128xf32>
    %c0_12 = arith.constant 0 : index
    %c0_13 = arith.constant 0 : index
    %22 = vector.load %arg5[%c0_12, %c0_13] : memref<1x128xf32, #tpu.memory_space<vmem>>, vector<1x128xf32>
    %23 = vector.broadcast %22 : vector<1x128xf32> to vector<32x128xf32>
    %24 = arith.addf %21, %23 : vector<32x128xf32>
    %25 = arith.mulf %24, %24 : vector<32x128xf32>
    %26 = arith.mulf %24, %25 : vector<32x128xf32>
    %cst_14 = arith.constant 4.471500e-02 : f32
    %27 = vector.broadcast %cst_14 : f32 to vector<32x128xf32>
    %28 = arith.mulf %27, %26 : vector<32x128xf32>
    %29 = arith.addf %24, %28 : vector<32x128xf32>
    %cst_15 = arith.constant 0.797884583 : f32
    %30 = vector.broadcast %cst_15 : f32 to vector<32x128xf32>
    %31 = arith.mulf %30, %29 : vector<32x128xf32>
    %32 = math.tanh %31 : vector<32x128xf32>
    %cst_16 = arith.constant 1.000000e+00 : f32
    %33 = vector.broadcast %cst_16 : f32 to vector<32x128xf32>
    %34 = arith.addf %33, %32 : vector<32x128xf32>
    %cst_17 = arith.constant 5.000000e-01 : f32
    %35 = vector.broadcast %cst_17 : f32 to vector<32x128xf32>
    %36 = arith.mulf %35, %34 : vector<32x128xf32>
    %37 = arith.mulf %24, %36 : vector<32x128xf32>
    %38 = vector.shape_cast %37 : vector<32x128xf32> to vector<2x16x128xf32>
    %cst_18 = arith.constant dense<0.000000e+00> : vector<2x128xf32>
    %39 = vector.multi_reduction <add>, %38, %cst_18 [1] : vector<2x16x128xf32> to vector<2x128xf32>
    %cst_19 = arith.constant 1.600000e+01 : f32
    %40 = vector.broadcast %cst_19 : f32 to vector<2x128xf32>
    %41 = arith.divf %39, %40 : vector<2x128xf32>
    %c0_20 = arith.constant 0 : index
    %c0_21 = arith.constant 0 : index
    %42 = vector.load %arg6[%c0_20, %c0_21] : memref<1x128xf32, #tpu.memory_space<vmem>>, vector<1x128xf32>
    %43 = vector.broadcast %42 : vector<1x128xf32> to vector<2x128xf32>
    %44 = arith.mulf %41, %43 : vector<2x128xf32>
    %cst_22 = arith.constant dense<0.000000e+00> : vector<2xf32>
    %45 = vector.multi_reduction <add>, %44, %cst_22 [1] : vector<2x128xf32> to vector<2xf32>
    %46 = vector.shape_cast %45 : vector<2xf32> to vector<2x1xf32>
    %47 = vector.shape_cast %46 : vector<2x1xf32> to vector<2x1xf32>
    %48 = vector.broadcast %47 : vector<2x1xf32> to vector<2x128xf32>
    %c0_23 = arith.constant 0 : index
    %c0_24 = arith.constant 0 : index
    %c0_25 = arith.constant 0 : index
    %49 = vector.load %arg7[%c0_23, %c0_24, %c0_25] : memref<1x2x128xf32, #tpu.memory_space<vmem>>, vector<1x2x128xf32>
    %50 = vector.shape_cast %49 : vector<1x2x128xf32> to vector<2x128xf32>
    %51 = vector.shape_cast %48 : vector<2x128xf32> to vector<1x2x128xf32>
    tpu.vector_store %arg7[%c0_23, %c0_24, %c0_25], %51 {strides = array<i32>} : memref<1x2x128xf32, #tpu.memory_space<vmem>>, vector<1x2x128xf32>,
    return
  }
  func.func @transform_0(%arg0: i32) -> (i32, i32) {
    %c0_i32 = arith.constant 0 : i32
    %c0_i32_0 = arith.constant 0 : i32
    return %arg0, %c0_i32 : i32, i32
  }
  func.func @transform_1(%arg0: i32) -> (i32, i32) {
    %c0_i32 = arith.constant 0 : i32
    %c0_i32_0 = arith.constant 0 : i32
    %c0_i32_1 = arith.constant 0 : i32
    return %c0_i32, %c0_i32_0 : i32, i32
  }
  func.func @transform_2(%arg0: i32) -> (i32, i32) {
    %c0_i32 = arith.constant 0 : i32
    %c0_i32_0 = arith.constant 0 : i32
    %c0_i32_1 = arith.constant 0 : i32
    return %c0_i32, %c0_i32_0 : i32, i32
  }
  func.func @transform_3(%arg0: i32) -> (i32, i32) {
    %c0_i32 = arith.constant 0 : i32
    %c0_i32_0 = arith.constant 0 : i32
    %c0_i32_1 = arith.constant 0 : i32
    return %c0_i32, %c0_i32_0 : i32, i32
  }
  func.func @transform_4(%arg0: i32) -> (i32, i32) {
    %c0_i32 = arith.constant 0 : i32
    %c0_i32_0 = arith.constant 0 : i32
    %c0_i32_1 = arith.constant 0 : i32
    return %c0_i32, %c0_i32_0 : i32, i32
  }
  func.func @transform_5(%arg0: i32) -> (i32, i32) {
    %c0_i32 = arith.constant 0 : i32
    %c0_i32_0 = arith.constant 0 : i32
    %c0_i32_1 = arith.constant 0 : i32
    return %c0_i32, %c0_i32_0 : i32, i32
  }
  func.func @transform_6(%arg0: i32) -> (i32, i32, i32) {
    %c0_i32 = arith.constant 0 : i32
    %c0_i32_0 = arith.constant 0 : i32
    %c0_i32_1 = arith.constant 0 : i32
    return %arg0, %c0_i32, %c0_i32_0 : i32, i32, i32
  }
}

</mosaic_0001>

<llo_original>
// kernel: iqa_forward.1
$region0: #{iqa_forward.1}
  #allocation0 [shape = 'u32[]', space=smem, size = 0x4, offset = 0x4, fixed_abs, tag = 'smem constant byte address 0x4 - core index']
  #allocation1 [shape = 'u32[144,128]{1,0:T(1,128)}', space=vmem, size = 0x12000, scoped, tag = 'internal scratch']
  %s0 = inlined_call_operand.vmem [shape: bf16[32,48], index: 0, kind: input, shape index: {}]
  %s1 = inlined_call_operand.vmem [shape: bf16[48,128], index: 1, kind: input, shape index: {}]
  %s2 = inlined_call_operand.vmem [shape: f32[1,128], index: 2, kind: input, shape index: {}]
  %s3 = inlined_call_operand.vmem [shape: bf16[128,128], index: 3, kind: input, shape index: {}]
  %s4 = inlined_call_operand.vmem [shape: f32[1,128], index: 4, kind: input, shape index: {}]
  %s5 = inlined_call_operand.vmem [shape: f32[1,128], index: 5, kind: input, shape index: {}]
  %s6 = inlined_call_operand.vmem [shape: f32[1,2,128], index: 6, kind: output, shape index: {}]
  %s7 = sld [smem:[#allocation0]]
  $region34: #{iqa_forward.1} parent=0
    _
  %s9 = ssub.s32 1, %s7
  %s10 = scalar_select 0, %s9, %s7
  // Predicated region
  $region2: #{iqa_forward.1} parent=0 // pred_check
    _
  $region3: #{iqa_forward.1} parent=0 // pred_check_branch
    %12 = sbr.rel (0) target = $region5
  $region4: #{iqa_forward.1} parent=0 // pred_region
    _
  $region5: #{iqa_forward.1} parent=0 // pred_fallthru
    _
  // Predicated region
  $region6: #{iqa_forward.1} parent=0 // pred_check
    _
  $region7: #{iqa_forward.1} parent=0 // pred_check_branch
    %14 = sbr.rel (0) target = $region9
  $region8: #{iqa_forward.1} parent=0 // pred_region
    _
  $region9: #{iqa_forward.1} parent=0 // pred_fallthru
    _
  // Predicated region
  $region10: #{iqa_forward.1} parent=0 // pred_check
    _
  $region11: #{iqa_forward.1} parent=0 // pred_check_branch
    %16 = sbr.rel (0) target = $region13
  $region12: #{iqa_forward.1} parent=0 // pred_region
    _
  $region13: #{iqa_forward.1} parent=0 // pred_fallthru
    _
  // Predicated region
  $region14: #{iqa_forward.1} parent=0 // pred_check
    _
  $region15: #{iqa_forward.1} parent=0 // pred_check_branch
    %18 = sbr.rel (0) target = $region17
  $region16: #{iqa_forward.1} parent=0 // pred_region
    _
  $region17: #{iqa_forward.1} parent=0 // pred_fallthru
    _
  // Predicated region
  $region18: #{iqa_forward.1} parent=0 // pred_check
    _
  $region19: #{iqa_forward.1} parent=0 // pred_check_branch
    %20 = sbr.rel (0) target = $region21
  $region20: #{iqa_forward.1} parent=0 // pred_region
    _
  $region21: #{iqa_forward.1} parent=0 // pred_fallthru
    _
  // Predicated region
  $region22: #{iqa_forward.1} parent=0 // pred_check
    _
  $region23: #{iqa_forward.1} parent=0 // pred_check_branch
    %22 = sbr.rel (0) target = $region25
  $region24: #{iqa_forward.1} parent=0 // pred_region
    _
  $region25: #{iqa_forward.1} parent=0 // pred_fallthru
    _
  %v28 = vld [vmem:[%s0] sm:$0xf]
  %v29 = vld [vmem:[%s0 + $0x4] sm:$0xf]
  %v30 = vld [vmem:[%s0 + $0x8] sm:$0xf]
  %v31 = vld [vmem:[%s0 + $0xc] sm:$0xf]
  %v32 = vld [vmem:[%s1] sm:$0xf]
  %v33 = vld [vmem:[%s1 + $0x4] sm:$0xf]
  %v34 = vld [vmem:[%s1 + $0x8] sm:$0xf]
  %v35 = vld [vmem:[%s1 + $0xc] sm:$0xf]
  %v36 = vld [vmem:[%s1 + $0x10] sm:$0xf]
  %v37 = vld [vmem:[%s1 + $0x14] sm:$0xf]
  %v38 = vld [vmem:[%s2] sm:$0x1]
  %v40 = vlaneseq
  %v41 = vshrl.u32 %v40, 7
  %v42 = vsub.s32 0, %v41
  %v43 = vrot.slane %v38, %v42
  %v49 = vunpack.c.l.b16 %v28
  %v50 = vunpack.c.l.b16 %v29
  %v51 = vunpack.c.l.b16 %v30
  %v52 = vunpack.c.l.b16 %v31
  %v53 = vpack.c.b16 %v50, %v49
  %v54 = vpack.c.b16 %v52, %v51
  %v61 = vunpack.c.l.b16 %v32
  %v62 = vunpack.c.l.b16 %v33
  %v63 = vunpack.c.l.b16 %v34
  %v64 = vunpack.c.l.b16 %v35
  %v65 = vunpack.c.l.b16 %v36
  %v66 = vunpack.c.l.b16 %v37
  %v67 = vpack.c.b16 %v62, %v61
  %v68 = vpack.c.b16 %v64, %v63
  %v69 = vpack.c.b16 %v66, %v65
  %vm73 = vcmask 392192
  %v75 = vsel %vm73, %v53, 0
  %v78 = vsel %vm73, %v54, 0
  %80 = vmatprep.subr.bf16.mxu0 0
  %81 = vmatpush1.bf16.msra.mxu0 0
  %82 = vmatprep.subr.bf16.mxu0 0
  %83 = vmatpush1.bf16.msra.mxu0 0
  %84 = vmatprep.subr.bf16.mxu0 0
  %85 = vmatpush1.bf16.msra.mxu0 0
  %86 = vmatprep.subr.bf16.mxu0 0
  %87 = vmatpush1.bf16.msra.mxu0 0
  %88 = vmatprep.subr.bf16.mxu0 0
  %89 = vmatpush1.bf16.msra.mxu0 0
  %90 = vmatprep.subr.bf16.mxu0 0
  %91 = vmatpush1.bf16.msra.mxu0 %v69
  %92 = vmatprep.subr.bf16.mxu0 0
  %93 = vmatpush1.bf16.msra.mxu0 %v68
  %94 = vmatprep.subr.bf16.mxu0 0
  %95 = vmatpush1.bf16.msra.mxu0 %v67
  %96 = vmatprep.subr.bf16.mxu0 0
  %97 = vmatpush2.bf16.msra.mxu0 0
  %98 = vmatprep.subr.bf16.mxu0 0
  %99 = vmatpush2.bf16.msra.mxu0 0
  %100 = vmatprep.subr.bf16.mxu0 0
  %101 = vmatpush2.bf16.msra.mxu0 0
  %102 = vmatprep.subr.bf16.mxu0 0
  %103 = vmatpush2.bf16.msra.mxu0 0
  %104 = vmatprep.subr.bf16.mxu0 0
  %105 = vmatpush2.bf16.msra.mxu0 0
  %106 = vmatprep.subr.bf16.mxu0 0
  %107 = vmatpush2.bf16.msra.mxu0 0
  %108 = vmatprep.subr.bf16.mxu0 0
  %109 = vmatpush2.bf16.msra.mxu0 0
  %110 = vmatprep.subr.bf16.mxu0 0
  %111 = vmatpush2.bf16.msra.mxu0 0
  %112 = vmatprep.mubr.bf16.mxu0 0
  %113 = vmatmul.mubr.bf16.gmra.mxu0 %v75
  %v114 = vpop.f32.mrf.mxu0
  %v115 = vadd.f32 %v43, %v114
  %v116 = vpop.f32.mrf.mxu0
  %v117 = vpop.f32.mrf.mxu0
  %v118 = vadd.f32 %v43, %v117
  %v119 = vpop.f32.mrf.mxu0
  %120 = vmatprep.mubr.bf16.mxu0 0
  %121 = vmatmul.mubr.bf16.gmra.mxu0 %v78
  %v122 = vpop.f32.mrf.mxu0
  %v123 = vadd.f32 %v43, %v122
  %v124 = vpop.f32.mrf.mxu0
  %v125 = vpop.f32.mrf.mxu0
  %v126 = vadd.f32 %v43, %v125
  %v127 = vpop.f32.mrf.mxu0
  %128 = vdwg.mxu0
  %v129 = vpack.c.bf16 %v118, %v115
  %v130 = vpack.c.bf16 %v126, %v123
  %v131 = vmul.bf16 %v129, %v129
  %v132 = vmul.bf16 %v130, %v130
  %v133 = vmul.bf16 %v129, %v131
  %v134 = vmul.bf16 %v130, %v132
  %v135 = vmul.bf16 %v133, 1027030327
  %v136 = vmul.bf16 %v134, 1027030327
  %v137 = vadd.bf16 %v129, %v135
  %v138 = vadd.bf16 %v130, %v136
  %v139 = vmul.bf16 %v137, 1061961548
  %v140 = vmul.bf16 %v138, 1061961548
  %v141 = vtanh.bf16.pop %v139
  %v142 = vtanh.bf16.pop %v140
  %v143 = vadd.bf16 %v141, 1065369472
  %v144 = vadd.bf16 %v142, 1065369472
  %v145 = vmul.bf16 %v143, 1056980736
  %v146 = vmul.bf16 %v144, 1056980736
  %v147 = vmul.bf16 %v129, %v145
  %v148 = vmul.bf16 %v130, %v146
  %v149 = vld [vmem:[%s3] sm:$0xf]
  %v150 = vld [vmem:[%s3 + $0x4] sm:$0xf]
  %v151 = vld [vmem:[%s3 + $0x8] sm:$0xf]
  %v152 = vld [vmem:[%s3 + $0xc] sm:$0xf]
  %v153 = vld [vmem:[%s3 + $0x10] sm:$0xf]
  %v154 = vld [vmem:[%s3 + $0x14] sm:$0xf]
  %v155 = vld [vmem:[%s3 + $0x18] sm:$0xf]
  %v156 = vld [vmem:[%s3 + $0x1c] sm:$0xf]
  %v157 = vld [vmem:[%s3 + $0x20] sm:$0xf]
  %v158 = vld [vmem:[%s3 + $0x24] sm:$0xf]
  %v159 = vld [vmem:[%s3 + $0x28] sm:$0xf]
  %v160 = vld [vmem:[%s3 + $0x2c] sm:$0xf]
  %v161 = vld [vmem:[%s3 + $0x30] sm:$0xf]
  %v162 = vld [vmem:[%s3 + $0x34] sm:$0xf]
  %v163 = vld [vmem:[%s3 + $0x38] sm:$0xf]
  %v164 = vld [vmem:[%s3 + $0x3c] sm:$0xf]
  %v165 = vld [vmem:[%s4] sm:$0x1]
  %v167 = vlaneseq
  %v168 = vshrl.u32 %v167, 7
  %v169 = vsub.s32 0, %v168
  %v170 = vrot.slane %v165, %v169
  %v188 = vunpack.c.l.b16 %v149
  %v189 = vunpack.c.l.b16 %v150
  %v190 = vunpack.c.l.b16 %v151
  %v191 = vunpack.c.l.b16 %v152
  %v192 = vunpack.c.l.b16 %v153
  %v193 = vunpack.c.l.b16 %v154
  %v194 = vunpack.c.l.b16 %v155
  %v195 = vunpack.c.l.b16 %v156
  %v196 = vunpack.c.l.b16 %v157
  %v197 = vunpack.c.l.b16 %v158
  %v198 = vunpack.c.l.b16 %v159
  %v199 = vunpack.c.l.b16 %v160
  %v200 = vunpack.c.l.b16 %v161
  %v201 = vunpack.c.l.b16 %v162
  %v202 = vunpack.c.l.b16 %v163
  %v203 = vunpack.c.l.b16 %v164
  %v204 = vpack.c.b16 %v189, %v188
  %v205 = vpack.c.b16 %v191, %v190
  %v206 = vpack.c.b16 %v193, %v192
  %v207 = vpack.c.b16 %v195, %v194
  %v208 = vpack.c.b16 %v197, %v196
  %v209 = vpack.c.b16 %v199, %v198
  %v210 = vpack.c.b16 %v201, %v200
  %v211 = vpack.c.b16 %v203, %v202
  %220 = vmatprep.subr.bf16.mxu0 0
  %221 = vmatpush1.bf16.msra.mxu0 %v211
  %222 = vmatprep.subr.bf16.mxu0 0
  %223 = vmatpush1.bf16.msra.mxu0 %v210
  %224 = vmatprep.subr.bf16.mxu0 0
  %225 = vmatpush1.bf16.msra.mxu0 %v209
  %226 = vmatprep.subr.bf16.mxu0 0
  %227 = vmatpush1.bf16.msra.mxu0 %v208
  %228 = vmatprep.subr.bf16.mxu0 0
  %229 = vmatpush1.bf16.msra.mxu0 %v207
  %230 = vmatprep.subr.bf16.mxu0 0
  %231 = vmatpush1.bf16.msra.mxu0 %v206
  %232 = vmatprep.subr.bf16.mxu0 0
  %233 = vmatpush1.bf16.msra.mxu0 %v205
  %234 = vmatprep.subr.bf16.mxu0 0
  %235 = vmatpush1.bf16.msra.mxu0 %v204
  %236 = vmatprep.subr.bf16.mxu0 0
  %237 = vmatpush2.bf16.msra.mxu0 0
  %238 = vmatprep.subr.bf16.mxu0 0
  %239 = vmatpush2.bf16.msra.mxu0 0
  %240 = vmatprep.subr.bf16.mxu0 0
  %241 = vmatpush2.bf16.msra.mxu0 0
  %242 = vmatprep.subr.bf16.mxu0 0
  %243 = vmatpush2.bf16.msra.mxu0 0
  %244 = vmatprep.subr.bf16.mxu0 0
  %245 = vmatpush2.bf16.msra.mxu0 0
  %246 = vmatprep.subr.bf16.mxu0 0
  %247 = vmatpush2.bf16.msra.mxu0 0
  %248 = vmatprep.subr.bf16.mxu0 0
  %249 = vmatpush2.bf16.msra.mxu0 0
  %250 = vmatprep.subr.bf16.mxu0 0
  %251 = vmatpush2.bf16.msra.mxu0 0
  %252 = vmatprep.mubr.bf16.mxu0 0
  %253 = vmatmul.mubr.bf16.gmra.mxu0 %v147
  %v254 = vpop.f32.mrf.mxu0
  %v255 = vadd.f32 %v170, %v254
  %v256 = vpop.f32.mrf.mxu0
  %v257 = vpop.f32.mrf.mxu0
  %v258 = vadd.f32 %v170, %v257
  %v259 = vpop.f32.mrf.mxu0
  %260 = vmatprep.mubr.bf16.mxu0 0
  %261 = vmatmul.mubr.bf16.gmra.mxu0 %v148
  %v262 = vpop.f32.mrf.mxu0
  %v263 = vadd.f32 %v170, %v262
  %v264 = vpop.f32.mrf.mxu0
  %v265 = vpop.f32.mrf.mxu0
  %v266 = vadd.f32 %v170, %v265
  %v267 = vpop.f32.mrf.mxu0
  %268 = vdwg.mxu0
  %v269 = vmul.f32 %v255, %v255
  %v270 = vmul.f32 %v258, %v258
  %v271 = vmul.f32 %v263, %v263
  %v272 = vmul.f32 %v266, %v266
  %v273 = vmul.f32 %v255, %v269
  %v274 = vmul.f32 %v258, %v270
  %v275 = vmul.f32 %v263, %v271
  %v276 = vmul.f32 %v266, %v272
  %v277 = vmul.f32 %v273, 0.044715
  %v278 = vmul.f32 %v274, 0.044715
  %v279 = vmul.f32 %v275, 0.044715
  %v280 = vmul.f32 %v276, 0.044715
  %v281 = vadd.f32 %v255, %v277
  %v282 = vadd.f32 %v258, %v278
  %v283 = vadd.f32 %v263, %v279
  %v284 = vadd.f32 %v266, %v280
  %v285 = vmul.f32 %v281, 0.7978846
  %v286 = vmul.f32 %v282, 0.7978846
  %v287 = vmul.f32 %v283, 0.7978846
  %v288 = vmul.f32 %v284, 0.7978846
  %v289 = vtanh.pop %v285
  %v290 = vtanh.pop %v286
  %v291 = vtanh.pop %v287
  %v292 = vtanh.pop %v288
  %v293 = vadd.f32 %v289, 1.0
  %v294 = vadd.f32 %v290, 1.0
  %v295 = vadd.f32 %v291, 1.0
  %v296 = vadd.f32 %v292, 1.0
  %v297 = vmul.f32 %v293, 0.5
  %v298 = vmul.f32 %v294, 0.5
  %v299 = vmul.f32 %v295, 0.5
  %v300 = vmul.f32 %v296, 0.5
  %v301 = vmul.f32 %v255, %v297
  %v302 = vmul.f32 %v258, %v298
  %v303 = vmul.f32 %v263, %v299
  %v304 = vmul.f32 %v266, %v300
  %v305 = vadd.f32 %v301, %v302
  %v306 = vrot.slane %v305, 4
  %v307 = vadd.f32 %v305, %v306
  %v308 = vrot.slane %v307, 2
  %v309 = vadd.f32 %v307, %v308
  %v310 = vrot.slane %v309, 1
  %v311 = vadd.f32 %v309, %v310
  %v312 = vadd.f32 %v303, %v304
  %v313 = vrot.slane %v312, 4
  %v314 = vadd.f32 %v312, %v313
  %v315 = vrot.slane %v314, 2
  %v316 = vadd.f32 %v314, %v315
  %v317 = vrot.slane %v316, 1
  %v318 = vadd.f32 %v316, %v317
  %v319 = vrcp.pop 16.0
  %v320 = vmul.f32 %v311, %v319
  %v321 = vmul.f32 %v318, %v319
  %v322 = vld [vmem:[%s5] sm:$0x1]
  %v324 = vlaneseq
  %v325 = vshrl.u32 %v324, 7
  %v326 = vsub.s32 0, %v325
  %v327 = vrot.slane %v322, %v326
  %v329 = vmul.f32 %v320, %v327
  %v330 = vmul.f32 %v321, %v327
  %v333 = vrot.slane %v330, 7
  %vm334 = vcmask 1041409
  %v335 = vsel %vm334, %v333, %v329
  %vm337 = vcmask 1041408
  %v338 = vsel %vm337, %v335, 0.0
  %339 = vadd.xlane.f32.xlu0 %v338
  %v340 = vpop.xlane.xlu0 %339
  %341 = vst [vmem:[%s6] sm:$0x3] %v340
  // Predicated region
  $region26: #{iqa_forward.1} parent=0 // pred_check
    _
  $region27: #{iqa_forward.1} parent=0 // pred_check_branch
    %343 = sbr.rel (0) target = $region29
  $region28: #{iqa_forward.1} parent=0 // pred_region
    _
  $region29: #{iqa_forward.1} parent=0 // pred_fallthru
    _
  // Predicated region
  $region30: #{iqa_forward.1} parent=0 // pred_check
    _
  $region31: #{iqa_forward.1} parent=0 // pred_check_branch
    %345 = sbr.rel (0) target = $region33
  $region32: #{iqa_forward.1} parent=0 // pred_region
    _
  $region33: #{iqa_forward.1} parent=0 // pred_fallthru
    _

</llo_original>
